<compile_context>
chip_gen: v5e
topology: v5e:2x2
jax: 0.10.0
libtpu: 0.0.40
codegen_flags: <defaults>
</compile_context>

<pallas_src>
import functools

import jax
import jax.numpy as jnp
from jax.experimental import pallas as pl
from jax.experimental.pallas import tpu as pltpu

EPS = 1e-5          # nn.BatchNorm2d default
NEG_BIG = -1e30     # stands in for -inf pad in max pool (every window has its real center)
MXU_DTYPE = jnp.bfloat16


# ---------------------------------------------------------------------------
# In-kernel helpers (lane-dense layout: activations are (N*H, W*C), f32)
# ---------------------------------------------------------------------------
def _bn_lane_dense(y, gamma, beta, r_mat, inv_m, relu):
    """BatchNorm2d(track_running_stats=False): batch statistics, biased variance.
    y: (NH, WC) f32; gamma/beta: (1, WC) channel-tiled; r_mat: (WC, WC) 0/1 channel
    reduce-and-broadcast matrix.  The per-channel reduction over the W lane groups
    is one tiny MXU dot per statistic (no serial XLU rotation tree).
    Single-pass variance E[y^2]-E[y]^2 (clamped at 0): fine at these magnitudes."""
    s1 = jnp.dot(jnp.sum(y, axis=0, keepdims=True), r_mat,
                 preferred_element_type=jnp.float32)
    s2 = jnp.dot(jnp.sum(y * y, axis=0, keepdims=True), r_mat,
                 preferred_element_type=jnp.float32)
    mean = s1 * inv_m
    var = jnp.maximum(s2 * inv_m - mean * mean, 0.0)
    out = (y - mean) * jax.lax.rsqrt(var + EPS) * gamma + beta
    return jnp.maximum(out, 0.0) if relu else out


def _masked_row_shift(y, delta, h_col, H, fill):
    """Shift the H axis (sublanes of the (NH, WC) slab) by `delta` rows within each
    image; rows falling outside [0, H) become `fill` ("same" padding).
    h_col: (NH, 1) per-row h index (hoisted by the caller)."""
    if delta == 0:
        return y
    NH = y.shape[0]
    rolled = pltpu.roll(y, shift=(-delta) % NH, axis=0)
    valid = jnp.logical_and(h_col + delta >= 0, h_col + delta < H)   # (NH, 1)
    return jnp.where(valid, rolled, fill)


def _masked_lane_shift(y, delta_w, w_row, W, C, fill):
    """Shift the W axis (lane axis, stride C) by `delta_w`; out-of-range -> fill.
    w_row: (1, WC) per-lane w index (hoisted by the caller)."""
    if delta_w == 0:
        return y
    WC = y.shape[1]
    rolled = pltpu.roll(y, shift=(-delta_w * C) % WC, axis=1)
    valid = jnp.logical_and(w_row + delta_w >= 0, w_row + delta_w < W)  # (1, WC)
    return jnp.where(valid, rolled, fill)


def _skip_sum(base, sk_ref, prev_ref):
    """base + sum_p sk[p] * prev[p] — runtime 0/1 weights (SMEM), fixed-size stack:
    no recompile per sampled skip pattern."""
    total = base
    for p in range(prev_ref.shape[0]):
        total = total + sk_ref[p] * prev_ref[p]
    return total


# ---------------------------------------------------------------------------
# Fused Pallas kernels (one pallas_call per ENASLayer forward)
# ---------------------------------------------------------------------------
def conv_branch_kernel(sk_ref, x_ref, w1_ref, g1_ref, b1_ref, bk_ref, g2_ref,
                       b2_ref, prev_ref, gf_ref, bf_ref, r_ref, o_ref, *, K, H, C):
    NH, WC = x_ref.shape
    W = WC // C
    pad = (K - 1) // 2
    inv_m = 1.0 / (NH * W)
    r_mat = r_ref[...]

    # 1x1 conv (block-diagonal bf16 matmul, f32 accumulate) + BN + ReLU
    y = _bn_lane_dense(
        jnp.dot(x_ref[...].astype(MXU_DTYPE), w1_ref[...],
                preferred_element_type=jnp.float32),
        g1_ref[...], b1_ref[...], r_mat, inv_m, relu=True)

    # KxK "same" conv: K banded bf16 matmuls (contraction = WC); H padding via masked
    # sublane rotations; W padding is zeros baked into the banded weights.
    # TODO(synk): on v6e/v7x pack two taps per dot (contraction 2*WC, 256-deep MXU).
    h_col = jax.lax.broadcasted_iota(jnp.int32, (NH, 1), 0) % H
    acc = jnp.zeros((NH, WC), jnp.float32)
    for dh in range(K):
        ys = _masked_row_shift(y, dh - pad, h_col, H, 0.0)
        acc = acc + jnp.dot(ys.astype(MXU_DTYPE), bk_ref[dh],
                            preferred_element_type=jnp.float32)
    z = _bn_lane_dense(acc, g2_ref[...], b2_ref[...], r_mat, inv_m, relu=True)

    # fused skip-add (runtime-masked) + final BatchNorm
    total = _skip_sum(z, sk_ref, prev_ref)
    o_ref[...] = _bn_lane_dense(total, gf_ref[...], bf_ref[...], r_mat, inv_m, relu=False)


def pool_branch_kernel(sk_ref, x_ref, w1_ref, g1_ref, b1_ref, prev_ref,
                       gf_ref, bf_ref, r_ref, o_ref, *, H, C, mode):
    NH, WC = x_ref.shape
    W = WC // C
    inv_m = 1.0 / (NH * W)
    r_mat = r_ref[...]

    y = _bn_lane_dense(
        jnp.dot(x_ref[...].astype(MXU_DTYPE), w1_ref[...],
                preferred_element_type=jnp.float32),
        g1_ref[...], b1_ref[...], r_mat, inv_m, relu=True)

    h_col = jax.lax.broadcasted_iota(jnp.int32, (NH, 1), 0) % H
    w_row = jax.lax.broadcasted_iota(jnp.int32, (1, WC), 1) // C
    fill = 0.0 if mode == "avg" else NEG_BIG
    combine = (lambda a, b: a + b) if mode == "avg" else jnp.maximum

    # separable 3x3 "same" pooling: 3-tap sublane (H) pass, then 3-tap lane (W) pass.
    yh = y
    for d in (-1, 1):
        yh = combine(yh, _masked_row_shift(y, d, h_col, H, fill))
    out = yh
    for d in (-1, 1):
        out = combine(out, _masked_lane_shift(yh, d, w_row, W, C, fill))
    # AvgPool2d(3,1,1) default count_include_pad=True -> always /9;
    # MaxPool2d pad behaves as -inf: every 3x3 window contains its real center.
    pooled = out * (1.0 / 9.0) if mode == "avg" else out

    total = _skip_sum(pooled, sk_ref, prev_ref)
    o_ref[...] = _bn_lane_dense(total, gf_ref[...], bf_ref[...], r_mat, inv_m, relu=False)


def _fused_call(kernel, n_vmem_in, out_shape, flops, bytes_accessed, transcendentals):
    # Whole arrays resident in VMEM (tiny shapes); single fused gridless kernel.
    # Explicit VMEM limit (v5e's scoped default is only 16 MiB) + cost estimate so
    # XLA schedules this tiny custom call sensibly.
    return pl.pallas_call(
        kernel,
        out_shape=jax.ShapeDtypeStruct(out_shape, jnp.float32),
        in_specs=([pl.BlockSpec(memory_space=pltpu.MemorySpace.SMEM)]
                  + [pl.BlockSpec(memory_space=pltpu.MemorySpace.VMEM)] * n_vmem_in),
        out_specs=pl.BlockSpec(memory_space=pltpu.MemorySpace.VMEM),
        compiler_params=pltpu.CompilerParams(vmem_limit_bytes=32 * 1024 * 1024),
        cost_estimate=pl.CostEstimate(flops=int(flops),
                                      transcendentals=int(transcendentals),
                                      bytes_accessed=int(bytes_accessed)),
    )


def _bytes_of(*arrays):
    return sum(int(a.size) * a.dtype.itemsize for a in arrays)


# ---------------------------------------------------------------------------
# One-time weight packing (hoisted OUT of the forward path — call at init /
# after each parameter update; depends only on the weights)
# ---------------------------------------------------------------------------
def _tile_channels(v, W):
    # (C,) -> (1, W*C) matching lane index = w*C + c
    C = v.shape[-1]
    return jnp.tile(v.reshape(1, C).astype(jnp.float32), (1, W))


def _block_diag_1x1(w1, W):
    # w1: (Cin, Cout) -> (W*C, W*C) block-diagonal: 1x1 conv as one lane-dense matmul
    return jnp.kron(jnp.eye(W, dtype=jnp.float32), w1.astype(jnp.float32))


def _banded_conv_weights(wk, W):
    # wk: (K, K, Cin, Cout) -> (K, W*C, W*C).  B[dh] folds the dw taps and the Cin
    # contraction into one banded matrix; zeros for out-of-range w give "same" padding.
    K = wk.shape[0]
    pad = (K - 1) // 2
    win = jnp.arange(W)[:, None]
    wout = jnp.arange(W)[None, :]
    bands = []
    for dh in range(K):
        b = None
        for dw in range(K):
            sel = (win == wout + (dw - pad)).astype(jnp.float32)      # (W, W)
            term = jnp.kron(sel, wk[dh, dw].astype(jnp.float32))      # (W*C, W*C)
            b = term if b is None else b + term
        bands.append(b)
    return jnp.stack(bands, axis=0)


def pack_params(params, W):
    """Pack weights into kernel layouts ONCE (block-diag 1x1 and banded KxK in bf16
    for the MXU, channel-tiled f32 gamma/beta, f32 BN channel-reduce matrix)."""
    C = params["bn_g"].shape[0]
    packed = {
        "bn_g": _tile_channels(params["bn_g"], W),
        "bn_b": _tile_channels(params["bn_b"], W),
        # (WC, WC) 0/1 matrix: per-channel sum over the W lane groups, broadcast back
        "reduce": jnp.kron(jnp.ones((W, W), jnp.float32),
                           jnp.eye(C, dtype=jnp.float32)),
    }
    for i in range(6):
        p = params[f"branch_{i}"]
        q = {"w1": _block_diag_1x1(p["w1"], W).astype(MXU_DTYPE),
             "g1": _tile_channels(p["g1"], W),
             "b1": _tile_channels(p["b1"], W)}
        if i in (0, 1, 2, 3):
            if i in (1, 3):
                # separable: depthwise(wd) then pointwise(wp) == dense KxK, wd[c]*wp[c,:]
                wk = jnp.einsum("ckl,cd->klcd", p["wd"], p["wp"])
            else:
                wk = p["wk"]
            q["bk"] = _banded_conv_weights(wk, W).astype(MXU_DTYPE)
            q["g2"] = _tile_channels(p["g2"], W)
            q["b2"] = _tile_channels(p["b2"], W)
        packed[f"branch_{i}"] = q
    return packed


# ---------------------------------------------------------------------------
# ENASLayer forward (branch dispatch is Python-level, as in the PyTorch module)
# ---------------------------------------------------------------------------
@jax.jit
def _conv_forward(x, prev_stack, sk, w1, g1, b1, bk, g2, b2, gf, bf, red):
    N, H, W, C = x.shape
    NH, WC = N * H, W * C
    P = prev_stack.shape[0]
    K = bk.shape[0]
    x_d = x.astype(jnp.float32).reshape(NH, WC)
    prev_d = prev_stack.astype(jnp.float32).reshape(P, NH, WC)
    flops = 2 * NH * WC * WC * (1 + K) + 3 * (2 * 2 * WC * WC) + 40 * NH * WC
    bytes_acc = _bytes_of(x_d, prev_d, w1, bk, red) + 4 * NH * WC + 8 * 8 * WC
    kern = functools.partial(conv_branch_kernel, K=K, H=H, C=C)
    out_d = _fused_call(kern, 11, (NH, WC), flops, bytes_acc, 3 * WC)(
        sk, x_d, w1, g1, b1, bk, g2, b2, prev_d, gf, bf, red)
    return out_d.reshape(N, H, W, C)


@functools.partial(jax.jit, static_argnames=("mode",))
def _pool_forward(x, prev_stack, sk, w1, g1, b1, gf, bf, red, *, mode):
    N, H, W, C = x.shape
    NH, WC = N * H, W * C
    P = prev_stack.shape[0]
    x_d = x.astype(jnp.float32).reshape(NH, WC)
    prev_d = prev_stack.astype(jnp.float32).reshape(P, NH, WC)
    flops = 2 * NH * WC * WC + 3 * (2 * 2 * WC * WC) + 50 * NH * WC
    bytes_acc = _bytes_of(x_d, prev_d, w1, red) + 4 * NH * WC + 8 * 8 * WC
    kern = functools.partial(pool_branch_kernel, H=H, C=C, mode=mode)
    out_d = _fused_call(kern, 8, (NH, WC), flops, bytes_acc, 3 * WC)(
        sk, x_d, w1, g1, b1, prev_d, gf, bf, red)
    return out_d.reshape(N, H, W, C)


def enas_layer_forward(x_nhwc, prev_stack, skip_weights, layer_type, packed):
    """Forward of one ENASLayer (same semantics as the PyTorch module's forward).

    x_nhwc:       (N, H, W, C) input.
    prev_stack:   (P, N, H, W, C) fixed-size stack of ALL previous layer outputs
                  (P is fixed per layer_id; for layer_id == 0 pass a 1-entry zero
                  stack with a zero skip weight).
    skip_weights: (P,) f32 0/1 mask == sample_arc[1]; runtime data, so re-sampling
                  the skip pattern does NOT trigger a retrace / Mosaic recompile.
    layer_type:   Python int == sample_arc[0] (branch dispatch is Python-level,
                  mirroring the PyTorch control flow: one compile per layer_type).
    packed:       output of pack_params() (computed once, reused every call).
    """
    layer_type = int(layer_type)
    br = packed[f"branch_{layer_type}"]
    common = (packed["bn_g"], packed["bn_b"], packed["reduce"])
    if layer_type in (0, 1, 2, 3):
        return _conv_forward(x_nhwc, prev_stack, skip_weights, br["w1"], br["g1"],
                             br["b1"], br["bk"], br["g2"], br["b2"], *common)
    if layer_type in (4, 5):
        return _pool_forward(x_nhwc, prev_stack, skip_weights, br["w1"], br["g1"],
                             br["b1"], *common,
                             mode="avg" if layer_type == 4 else "max")
    raise ValueError(f"Unknown layer_type {layer_type}")


# ---------------------------------------------------------------------------
# Pure-JAX reference (mirrors the PyTorch module) for correctness checking
# ---------------------------------------------------------------------------
def _bn_ref(y, gamma, beta, relu):
    mean = jnp.mean(y, axis=(0, 1, 2), keepdims=True)
    var = jnp.mean((y - mean) ** 2, axis=(0, 1, 2), keepdims=True)
    out = (y - mean) * jax.lax.rsqrt(var + EPS) * gamma.reshape(1, 1, 1, -1) \
        + beta.reshape(1, 1, 1, -1)
    return jnp.maximum(out, 0.0) if relu else out


def _conv1x1_ref(x, w1):
    return jnp.einsum("nhwc,cd->nhwd", x, w1)


def _convk_ref(x, wk):
    K = wk.shape[0]
    pad = (K - 1) // 2
    N, H, W, _ = x.shape
    xp = jnp.pad(x, ((0, 0), (pad, pad), (pad, pad), (0, 0)))
    out = jnp.zeros((N, H, W, wk.shape[-1]), jnp.float32)
    for dh in range(K):
        for dw in range(K):
            out = out + jnp.einsum("nhwc,cd->nhwd",
                                   xp[:, dh:dh + H, dw:dw + W, :], wk[dh, dw])
    return out


def _depthwise_ref(x, wd):
    K = wd.shape[-1]
    pad = (K - 1) // 2
    N, H, W, _ = x.shape
    xp = jnp.pad(x, ((0, 0), (pad, pad), (pad, pad), (0, 0)))
    out = jnp.zeros_like(x)
    for dh in range(K):
        for dw in range(K):
            out = out + xp[:, dh:dh + H, dw:dw + W, :] * wd[:, dh, dw]
    return out


def _pool_ref(x, mode):
    N, H, W, _ = x.shape
    if mode == "avg":
        xp = jnp.pad(x, ((0, 0), (1, 1), (1, 1), (0, 0)))
        out = jnp.zeros_like(x)
        for dh in range(3):
            for dw in range(3):
                out = out + xp[:, dh:dh + H, dw:dw + W, :]
        return out / 9.0
    xp = jnp.pad(x, ((0, 0), (1, 1), (1, 1), (0, 0)), constant_values=-jnp.inf)
    out = jnp.full_like(x, -jnp.inf)
    for dh in range(3):
        for dw in range(3):
            out = jnp.maximum(out, xp[:, dh:dh + H, dw:dw + W, :])
    return out


def enas_layer_ref(x, prev_layers, sample_arc, params, layer_id):
    layer_type = int(sample_arc[0])
    skip_indices = list(sample_arc[1]) if layer_id > 0 else []
    p = params[f"branch_{layer_type}"]
    h = _bn_ref(_conv1x1_ref(x, p["w1"]), p["g1"], p["b1"], relu=True)
    if layer_type in (0, 1, 2, 3):
        if layer_type in (1, 3):
            y = _conv1x1_ref(_depthwise_ref(h, p["wd"]), p["wp"])
        else:
            y = _convk_ref(h, p["wk"])
        out = _bn_ref(y, p["g2"], p["b2"], relu=True)
    else:
        out = _pool_ref(h, "avg" if layer_type == 4 else "max")
    for i, s in enumerate(skip_indices):
        if s == 1:
            out = out + prev_layers[i]
    return _bn_ref(out, params["bn_g"], params["bn_b"], relu=False)


# ---------------------------------------------------------------------------
# Deterministic parameter init (shapes follow the nn.Module __init__)
# ---------------------------------------------------------------------------
def init_params(key, C):
    ks = iter(jax.random.split(key, 64))

    def nrm(shape, scale=0.1):
        return scale * jax.random.normal(next(ks), shape, jnp.float32)

    params = {}
    branch_cfg = [(3, False), (3, True), (5, False), (5, True)]   # branches 0..3
    for i, (K, sep) in enumerate(branch_cfg):
        p = {
            "w1": nrm((C, C)),                 # 1x1 conv weight, (Cin, Cout)
            "g1": 1.0 + nrm((C,)), "b1": nrm((C,)),
            "g2": 1.0 + nrm((C,)), "b2": nrm((C,)),
        }
        if sep:
            p["wd"] = nrm((C, K, K))           # depthwise (C taps of KxK)
            p["wp"] = nrm((C, C))              # pointwise 1x1, (Cin, Cout)
        else:
            p["wk"] = nrm((K, K, C, C))        # dense KxK conv, (dh, dw, Cin, Cout)
        params[f"branch_{i}"] = p
    for i in (4, 5):                           # pool branches
        params[f"branch_{i}"] = {"w1": nrm((C, C)),
                                 "g1": 1.0 + nrm((C,)), "b1": nrm((C,))}
    params["bn_g"] = 1.0 + nrm((C,))
    params["bn_b"] = nrm((C,))
    return params


# ---------------------------------------------------------------------------
if __name__ == "__main__":
    key = jax.random.PRNGKey(0)
    N, H, W, C = 2, 16, 16, 8   # W*C = 128 -> lane-dense; in_planes == out_planes == 8
    k_x, k_p0, k_p1, k_par = jax.random.split(key, 4)

    x = jax.random.normal(k_x, (N, H, W, C), jnp.float32)
    prev0 = jax.random.normal(k_p0, (N, H, W, C), jnp.float32)
    prev1 = jax.random.normal(k_p1, (N, H, W, C), jnp.float32)
    prev_layers = [prev0, prev1]

    params = init_params(k_par, C)
    packed = pack_params(params, W)              # hoisted: ONCE, not per forward
    prev_stack = jnp.stack(prev_layers, axis=0)  # fixed-size stack of ALL prev layers
    jax.block_until_ready((packed, prev_stack))

    TOL = 5e-2   # allows for bf16 MXU operands (accumulation / BN statistics stay f32)

    for layer_type in range(6):                      # exercise every branch / kernel
        for skips in ([1, 0], [1, 1]):               # runtime skip patterns, no recompile
            sk = jnp.asarray(skips, jnp.float32)
            out = enas_layer_forward(x, prev_stack, sk, layer_type, packed)
            jax.block_until_ready(out)
            assert out.shape == (N, H, W, C)
            assert bool(jnp.all(jnp.isfinite(out)))
            ref = enas_layer_ref(x, prev_layers, (layer_type, skips), params, layer_id=1)
            err = float(jnp.max(jnp.abs(out - ref)))
            assert err < TOL, f"branch {layer_type} skips {skips}: max |err| = {err}"

    # layer_id == 0 path (no skip connections): 1-entry zero stack, zero skip weight
    out0 = enas_layer_forward(x, jnp.zeros((1, N, H, W, C), jnp.float32),
                              jnp.zeros((1,), jnp.float32), 2, packed)
    jax.block_until_ready(out0)
    ref0 = enas_layer_ref(x, [], (2, []), params, layer_id=0)
    assert float(jnp.max(jnp.abs(out0 - ref0))) < TOL

    print("KERNEL_OK")
</pallas_src>

<mosaic_0001>
module attributes {stable_mosaic.version = 11 : i64} {
  func.func @conv_branch_kernel(%arg0: memref<2xf32, #tpu.memory_space<smem>>, %arg1: memref<32x128xf32, #tpu.memory_space<vmem>>, %arg2: memref<128x128xbf16, #tpu.memory_space<vmem>>, %arg3: memref<1x128xf32, #tpu.memory_space<vmem>>, %arg4: memref<1x128xf32, #tpu.memory_space<vmem>>, %arg5: memref<3x128x128xbf16, #tpu.memory_space<vmem>>, %arg6: memref<1x128xf32, #tpu.memory_space<vmem>>, %arg7: memref<1x128xf32, #tpu.memory_space<vmem>>, %arg8: memref<2x32x128xf32, #tpu.memory_space<vmem>>, %arg9: memref<1x128xf32, #tpu.memory_space<vmem>>, %arg10: memref<1x128xf32, #tpu.memory_space<vmem>>, %arg11: memref<128x128xf32, #tpu.memory_space<vmem>>, %arg12: memref<32x128xf32, #tpu.memory_space<vmem>>) attributes {dimension_semantics = [], scalar_prefetch = 0 : i64, scratch_operands = 0 : i64, tpu.core_type = #tpu.core_type<tc>} {
    %c0 = arith.constant 0 : index
    %c0_0 = arith.constant 0 : index
    %0 = vector.load %arg11[%c0, %c0_0] : memref<128x128xf32, #tpu.memory_space<vmem>>, vector<128x128xf32>
    %c0_1 = arith.constant 0 : index
    %c0_2 = arith.constant 0 : index
    %1 = vector.load %arg1[%c0_1, %c0_2] : memref<32x128xf32, #tpu.memory_space<vmem>>, vector<32x128xf32>
    %2 = arith.truncf %1 : vector<32x128xf32> to vector<32x128xbf16>
    %c0_3 = arith.constant 0 : index
    %c0_4 = arith.constant 0 : index
    %3 = vector.load %arg2[%c0_3, %c0_4] : memref<128x128xbf16, #tpu.memory_space<vmem>>, vector<128x128xbf16>
    %cst = arith.constant dense<0.000000e+00> : vector<32x128xf32>
    %4 = tpu.matmul %2, %3, %cst {dimension_numbers = #tpu.dot_dimension_numbers<[1], [0], [0], [1], [0, 0, 1, 1], [], []>} : vector<32x128xbf16>, vector<128x128xbf16>, vector<32x128xf32> -> vector<32x128xf32>
    %c0_5 = arith.constant 0 : index
    %c0_6 = arith.constant 0 : index
    %5 = vector.load %arg3[%c0_5, %c0_6] : memref<1x128xf32, #tpu.memory_space<vmem>>, vector<1x128xf32>
    %c0_7 = arith.constant 0 : index
    %c0_8 = arith.constant 0 : index
    %6 = vector.load %arg4[%c0_7, %c0_8] : memref<1x128xf32, #tpu.memory_space<vmem>>, vector<1x128xf32>
    %cst_9 = arith.constant dense<0.000000e+00> : vector<128xf32>
    %7 = vector.multi_reduction <add>, %4, %cst_9 [0] : vector<32x128xf32> to vector<128xf32>
    %8 = vector.shape_cast %7 : vector<128xf32> to vector<1x128xf32>
    %cst_10 = arith.constant dense<0.000000e+00> : vector<1x128xf32>
    %9 = tpu.matmul %8, %0, %cst_10 {dimension_numbers = #tpu.dot_dimension_numbers<[1], [0], [0], [1], [0, 0, 1, 1], [], []>} : vector<1x128xf32>, vector<128x128xf32>, vector<1x128xf32> -> vector<1x128xf32>
    %10 = arith.mulf %4, %4 : vector<32x128xf32>
    %cst_11 = arith.constant dense<0.000000e+00> : vector<128xf32>
    %11 = vector.multi_reduction <add>, %10, %cst_11 [0] : vector<32x128xf32> to vector<128xf32>
    %12 = vector.shape_cast %11 : vector<128xf32> to vector<1x128xf32>
    %cst_12 = arith.constant dense<0.000000e+00> : vector<1x128xf32>
    %13 = tpu.matmul %12, %0, %cst_12 {dimension_numbers = #tpu.dot_dimension_numbers<[1], [0], [0], [1], [0, 0, 1, 1], [], []>} : vector<1x128xf32>, vector<128x128xf32>, vector<1x128xf32> -> vector<1x128xf32>
    %cst_13 = arith.constant 0.001953125 : f32
    %14 = vector.broadcast %cst_13 : f32 to vector<1x128xf32>
    %15 = arith.mulf %9, %14 : vector<1x128xf32>
    %cst_14 = arith.constant 0.001953125 : f32
    %16 = vector.broadcast %cst_14 : f32 to vector<1x128xf32>
    %17 = arith.mulf %13, %16 : vector<1x128xf32>
    %18 = arith.mulf %15, %15 : vector<1x128xf32>
    %19 = arith.subf %17, %18 : vector<1x128xf32>
    %cst_15 = arith.constant 0.000000e+00 : f32
    %20 = vector.broadcast %cst_15 : f32 to vector<1x128xf32>
    %21 = arith.maximumf %19, %20 : vector<1x128xf32>
    %22 = vector.broadcast %15 : vector<1x128xf32> to vector<32x128xf32>
    %23 = arith.subf %4, %22 : vector<32x128xf32>
    %cst_16 = arith.constant 9.99999974E-6 : f32
    %24 = vector.broadcast %cst_16 : f32 to vector<1x128xf32>
    %25 = arith.addf %21, %24 : vector<1x128xf32>
    %26 = math.rsqrt %25 : vector<1x128xf32>
    %27 = vector.broadcast %26 : vector<1x128xf32> to vector<32x128xf32>
    %28 = arith.mulf %23, %27 : vector<32x128xf32>
    %29 = vector.broadcast %5 : vector<1x128xf32> to vector<32x128xf32>
    %30 = arith.mulf %28, %29 : vector<32x128xf32>
    %31 = vector.broadcast %6 : vector<1x128xf32> to vector<32x128xf32>
    %32 = arith.addf %30, %31 : vector<32x128xf32>
    %cst_17 = arith.constant 0.000000e+00 : f32
    %33 = vector.broadcast %cst_17 : f32 to vector<32x128xf32>
    %34 = arith.maximumf %32, %33 : vector<32x128xf32>
    %35 = tpu.iota {dimensions = array<i32: 0>} : vector<32x1xi32>
    %c16_i32 = arith.constant 16 : i32
    %c0_i32 = arith.constant 0 : i32
    %36 = arith.cmpi eq, %c16_i32, %c0_i32 : i32
    %c1_i32 = arith.constant 1 : i32
    %37 = arith.select %36, %c1_i32, %c16_i32 : i32
    %38 = vector.broadcast %37 : i32 to vector<32x1xi32>
    %39 = arith.remsi %35, %38 : vector<32x1xi32>
    %c0_i32_18 = arith.constant 0 : i32
    %40 = vector.broadcast %c0_i32_18 : i32 to vector<32x1xi32>
    %41 = arith.cmpi ne, %39, %40 : vector<32x1xi32>
    %c0_i32_19 = arith.constant 0 : i32
    %42 = vector.broadcast %c0_i32_19 : i32 to vector<32x1xi32>
    %43 = arith.cmpi slt, %39, %42 : vector<32x1xi32>
    %c0_i32_20 = arith.constant 0 : i32
    %44 = arith.cmpi slt, %37, %c0_i32_20 : i32
    %45 = vector.broadcast %44 : i1 to vector<32x1xi1>
    %46 = vector.broadcast %45 : vector<32x1xi1> to vector<32x1xi1>
    %47 = arith.xori %43, %46 : vector<32x1xi1>
    %48 = arith.andi %47, %41 : vector<32x1xi1>
    %49 = vector.broadcast %37 : i32 to vector<32x1xi32>
    %50 = arith.addi %39, %49 : vector<32x1xi32>
    %51 = arith.select %48, %50, %39 : vector<32x1xi1>, vector<32x1xi32>
    %cst_21 = arith.constant 0.000000e+00 : f32
    %52 = vector.broadcast %cst_21 : f32 to vector<32x128xf32>
    %c1_i32_22 = arith.constant 1 : i32
    %53 = tpu.dynamic_rotate %34 by %c1_i32_22 dim 0 : vector<32x128xf32>, i32 -> vector<32x128xf32>
    %c-1_i32 = arith.constant -1 : i32
    %54 = vector.broadcast %c-1_i32 : i32 to vector<32x1xi32>
    %55 = arith.addi %51, %54 : vector<32x1xi32>
    %c0_i32_23 = arith.constant 0 : i32
    %56 = vector.broadcast %c0_i32_23 : i32 to vector<32x1xi32>
    %57 = arith.cmpi sge, %55, %56 : vector<32x1xi32>
    %c-1_i32_24 = arith.constant -1 : i32
    %58 = vector.broadcast %c-1_i32_24 : i32 to vector<32x1xi32>
    %59 = arith.addi %51, %58 : vector<32x1xi32>
    %c16_i32_25 = arith.constant 16 : i32
    %60 = vector.broadcast %c16_i32_25 : i32 to vector<32x1xi32>
    %61 = arith.cmpi slt, %59, %60 : vector<32x1xi32>
    %62 = arith.andi %57, %61 : vector<32x1xi1>
    %cst_26 = arith.constant 0.000000e+00 : f32
    %63 = vector.shape_cast %62 : vector<32x1xi1> to vector<32x1xi1>
    %64 = vector.broadcast %63 : vector<32x1xi1> to vector<32x128xi1>
    %65 = vector.broadcast %cst_26 : f32 to vector<32x128xf32>
    %66 = arith.select %64, %53, %65 : vector<32x128xi1>, vector<32x128xf32>
    %67 = arith.truncf %66 : vector<32x128xf32> to vector<32x128xbf16>
    %c0_27 = arith.constant 0 : index
    %c0_28 = arith.constant 0 : index
    %c0_29 = arith.constant 0 : index
    %68 = vector.load %arg5[%c0_27, %c0_28, %c0_29] : memref<3x128x128xbf16, #tpu.memory_space<vmem>>, vector<1x128x128xbf16>
    %69 = vector.shape_cast %68 : vector<1x128x128xbf16> to vector<128x128xbf16>
    %cst_30 = arith.constant dense<0.000000e+00> : vector<32x128xf32>
    %70 = tpu.matmul %67, %69, %cst_30 {dimension_numbers = #tpu.dot_dimension_numbers<[1], [0], [0], [1], [0, 0, 1, 1], [], []>} : vector<32x128xbf16>, vector<128x128xbf16>, vector<32x128xf32> -> vector<32x128xf32>
    %71 = arith.addf %52, %70 : vector<32x128xf32>
    %72 = arith.truncf %34 : vector<32x128xf32> to vector<32x128xbf16>
    %c1 = arith.constant 1 : index
    %c0_31 = arith.constant 0 : index
    %c0_32 = arith.constant 0 : index
    %73 = vector.load %arg5[%c1, %c0_31, %c0_32] : memref<3x128x128xbf16, #tpu.memory_space<vmem>>, vector<1x128x128xbf16>
    %74 = vector.shape_cast %73 : vector<1x128x128xbf16> to vector<128x128xbf16>
    %cst_33 = arith.constant dense<0.000000e+00> : vector<32x128xf32>
    %75 = tpu.matmul %72, %74, %cst_33 {dimension_numbers = #tpu.dot_dimension_numbers<[1], [0], [0], [1], [0, 0, 1, 1], [], []>} : vector<32x128xbf16>, vector<128x128xbf16>, vector<32x128xf32> -> vector<32x128xf32>
    %76 = arith.addf %71, %75 : vector<32x128xf32>
    %c31_i32 = arith.constant 31 : i32
    %77 = tpu.dynamic_rotate %34 by %c31_i32 dim 0 : vector<32x128xf32>, i32 -> vector<32x128xf32>
    %c1_i32_34 = arith.constant 1 : i32
    %78 = vector.broadcast %c1_i32_34 : i32 to vector<32x1xi32>
    %79 = arith.addi %51, %78 : vector<32x1xi32>
    %c0_i32_35 = arith.constant 0 : i32
    %80 = vector.broadcast %c0_i32_35 : i32 to vector<32x1xi32>
    %81 = arith.cmpi sge, %79, %80 : vector<32x1xi32>
    %c1_i32_36 = arith.constant 1 : i32
    %82 = vector.broadcast %c1_i32_36 : i32 to vector<32x1xi32>
    %83 = arith.addi %51, %82 : vector<32x1xi32>
    %c16_i32_37 = arith.constant 16 : i32
    %84 = vector.broadcast %c16_i32_37 : i32 to vector<32x1xi32>
    %85 = arith.cmpi slt, %83, %84 : vector<32x1xi32>
    %86 = arith.andi %81, %85 : vector<32x1xi1>
    %cst_38 = arith.constant 0.000000e+00 : f32
    %87 = vector.shape_cast %86 : vector<32x1xi1> to vector<32x1xi1>
    %88 = vector.broadcast %87 : vector<32x1xi1> to vector<32x128xi1>
    %89 = vector.broadcast %cst_38 : f32 to vector<32x128xf32>
    %90 = arith.select %88, %77, %89 : vector<32x128xi1>, vector<32x128xf32>
    %91 = arith.truncf %90 : vector<32x128xf32> to vector<32x128xbf16>
    %c2 = arith.constant 2 : index
    %c0_39 = arith.constant 0 : index
    %c0_40 = arith.constant 0 : index
    %92 = vector.load %arg5[%c2, %c0_39, %c0_40] : memref<3x128x128xbf16, #tpu.memory_space<vmem>>, vector<1x128x128xbf16>
    %93 = vector.shape_cast %92 : vector<1x128x128xbf16> to vector<128x128xbf16>
    %cst_41 = arith.constant dense<0.000000e+00> : vector<32x128xf32>
    %94 = tpu.matmul %91, %93, %cst_41 {dimension_numbers = #tpu.dot_dimension_numbers<[1], [0], [0], [1], [0, 0, 1, 1], [], []>} : vector<32x128xbf16>, vector<128x128xbf16>, vector<32x128xf32> -> vector<32x128xf32>
    %95 = arith.addf %76, %94 : vector<32x128xf32>
    %c0_42 = arith.constant 0 : index
    %c0_43 = arith.constant 0 : index
    %96 = vector.load %arg6[%c0_42, %c0_43] : memref<1x128xf32, #tpu.memory_space<vmem>>, vector<1x128xf32>
    %c0_44 = arith.constant 0 : index
    %c0_45 = arith.constant 0 : index
    %97 = vector.load %arg7[%c0_44, %c0_45] : memref<1x128xf32, #tpu.memory_space<vmem>>, vector<1x128xf32>
    %cst_46 = arith.constant dense<0.000000e+00> : vector<128xf32>
    %98 = vector.multi_reduction <add>, %95, %cst_46 [0] : vector<32x128xf32> to vector<128xf32>
    %99 = vector.shape_cast %98 : vector<128xf32> to vector<1x128xf32>
    %cst_47 = arith.constant dense<0.000000e+00> : vector<1x128xf32>
    %100 = tpu.matmul %99, %0, %cst_47 {dimension_numbers = #tpu.dot_dimension_numbers<[1], [0], [0], [1], [0, 0, 1, 1], [], []>} : vector<1x128xf32>, vector<128x128xf32>, vector<1x128xf32> -> vector<1x128xf32>
    %101 = arith.mulf %95, %95 : vector<32x128xf32>
    %cst_48 = arith.constant dense<0.000000e+00> : vector<128xf32>
    %102 = vector.multi_reduction <add>, %101, %cst_48 [0] : vector<32x128xf32> to vector<128xf32>
    %103 = vector.shape_cast %102 : vector<128xf32> to vector<1x128xf32>
    %cst_49 = arith.constant dense<0.000000e+00> : vector<1x128xf32>
    %104 = tpu.matmul %103, %0, %cst_49 {dimension_numbers = #tpu.dot_dimension_numbers<[1], [0], [0], [1], [0, 0, 1, 1], [], []>} : vector<1x128xf32>, vector<128x128xf32>, vector<1x128xf32> -> vector<1x128xf32>
    %cst_50 = arith.constant 0.001953125 : f32
    %105 = vector.broadcast %cst_50 : f32 to vector<1x128xf32>
    %106 = arith.mulf %100, %105 : vector<1x128xf32>
    %cst_51 = arith.constant 0.001953125 : f32
    %107 = vector.broadcast %cst_51 : f32 to vector<1x128xf32>
    %108 = arith.mulf %104, %107 : vector<1x128xf32>
    %109 = arith.mulf %106, %106 : vector<1x128xf32>
    %110 = arith.subf %108, %109 : vector<1x128xf32>
    %cst_52 = arith.constant 0.000000e+00 : f32
    %111 = vector.broadcast %cst_52 : f32 to vector<1x128xf32>
    %112 = arith.maximumf %110, %111 : vector<1x128xf32>
    %113 = vector.broadcast %106 : vector<1x128xf32> to vector<32x128xf32>
    %114 = arith.subf %95, %113 : vector<32x128xf32>
    %cst_53 = arith.constant 9.99999974E-6 : f32
    %115 = vector.broadcast %cst_53 : f32 to vector<1x128xf32>
    %116 = arith.addf %112, %115 : vector<1x128xf32>
    %117 = math.rsqrt %116 : vector<1x128xf32>
    %118 = vector.broadcast %117 : vector<1x128xf32> to vector<32x128xf32>
    %119 = arith.mulf %114, %118 : vector<32x128xf32>
    %120 = vector.broadcast %96 : vector<1x128xf32> to vector<32x128xf32>
    %121 = arith.mulf %119, %120 : vector<32x128xf32>
    %122 = vector.broadcast %97 : vector<1x128xf32> to vector<32x128xf32>
    %123 = arith.addf %121, %122 : vector<32x128xf32>
    %cst_54 = arith.constant 0.000000e+00 : f32
    %124 = vector.broadcast %cst_54 : f32 to vector<32x128xf32>
    %125 = arith.maximumf %123, %124 : vector<32x128xf32>
    %c0_55 = arith.constant 0 : index
    %126 = memref.load %arg0[%c0_55] : memref<2xf32, #tpu.memory_space<smem>>
    %c0_56 = arith.constant 0 : index
    %c0_57 = arith.constant 0 : index
    %c0_58 = arith.constant 0 : index
    %127 = vector.load %arg8[%c0_56, %c0_57, %c0_58] : memref<2x32x128xf32, #tpu.memory_space<vmem>>, vector<1x32x128xf32>
    %128 = vector.shape_cast %127 : vector<1x32x128xf32> to vector<32x128xf32>
    %129 = vector.broadcast %126 : f32 to vector<32x128xf32>
    %130 = arith.mulf %129, %128 : vector<32x128xf32>
    %131 = arith.addf %125, %130 : vector<32x128xf32>
    %c1_59 = arith.constant 1 : index
    %132 = memref.load %arg0[%c1_59] : memref<2xf32, #tpu.memory_space<smem>>
    %c1_60 = arith.constant 1 : index
    %c0_61 = arith.constant 0 : index
    %c0_62 = arith.constant 0 : index
    %133 = vector.load %arg8[%c1_60, %c0_61, %c0_62] : memref<2x32x128xf32, #tpu.memory_space<vmem>>, vector<1x32x128xf32>
    %134 = vector.shape_cast %133 : vector<1x32x128xf32> to vector<32x128xf32>
    %135 = vector.broadcast %132 : f32 to vector<32x128xf32>
    %136 = arith.mulf %135, %134 : vector<32x128xf32>
    %137 = arith.addf %131, %136 : vector<32x128xf32>
    %c0_63 = arith.constant 0 : index
    %c0_64 = arith.constant 0 : index
    %138 = vector.load %arg9[%c0_63, %c0_64] : memref<1x128xf32, #tpu.memory_space<vmem>>, vector<1x128xf32>
    %c0_65 = arith.constant 0 : index
    %c0_66 = arith.constant 0 : index
    %139 = vector.load %arg10[%c0_65, %c0_66] : memref<1x128xf32, #tpu.memory_space<vmem>>, vector<1x128xf32>
    %cst_67 = arith.constant dense<0.000000e+00> : vector<128xf32>
    %140 = vector.multi_reduction <add>, %137, %cst_67 [0] : vector<32x128xf32> to vector<128xf32>
    %141 = vector.shape_cast %140 : vector<128xf32> to vector<1x128xf32>
    %cst_68 = arith.constant dense<0.000000e+00> : vector<1x128xf32>
    %142 = tpu.matmul %141, %0, %cst_68 {dimension_numbers = #tpu.dot_dimension_numbers<[1], [0], [0], [1], [0, 0, 1, 1], [], []>} : vector<1x128xf32>, vector<128x128xf32>, vector<1x128xf32> -> vector<1x128xf32>
    %143 = arith.mulf %137, %137 : vector<32x128xf32>
    %cst_69 = arith.constant dense<0.000000e+00> : vector<128xf32>
    %144 = vector.multi_reduction <add>, %143, %cst_69 [0] : vector<32x128xf32> to vector<128xf32>
    %145 = vector.shape_cast %144 : vector<128xf32> to vector<1x128xf32>
    %cst_70 = arith.constant dense<0.000000e+00> : vector<1x128xf32>
    %146 = tpu.matmul %145, %0, %cst_70 {dimension_numbers = #tpu.dot_dimension_numbers<[1], [0], [0], [1], [0, 0, 1, 1], [], []>} : vector<1x128xf32>, vector<128x128xf32>, vector<1x128xf32> -> vector<1x128xf32>
    %cst_71 = arith.constant 0.001953125 : f32
    %147 = vector.broadcast %cst_71 : f32 to vector<1x128xf32>
    %148 = arith.mulf %142, %147 : vector<1x128xf32>
    %cst_72 = arith.constant 0.001953125 : f32
    %149 = vector.broadcast %cst_72 : f32 to vector<1x128xf32>
    %150 = arith.mulf %146, %149 : vector<1x128xf32>
    %151 = arith.mulf %148, %148 : vector<1x128xf32>
    %152 = arith.subf %150, %151 : vector<1x128xf32>
    %cst_73 = arith.constant 0.000000e+00 : f32
    %153 = vector.broadcast %cst_73 : f32 to vector<1x128xf32>
    %154 = arith.maximumf %152, %153 : vector<1x128xf32>
    %155 = vector.broadcast %148 : vector<1x128xf32> to vector<32x128xf32>
    %156 = arith.subf %137, %155 : vector<32x128xf32>
    %cst_74 = arith.constant 9.99999974E-6 : f32
    %157 = vector.broadcast %cst_74 : f32 to vector<1x128xf32>
    %158 = arith.addf %154, %157 : vector<1x128xf32>
    %159 = math.rsqrt %158 : vector<1x128xf32>
    %160 = vector.broadcast %159 : vector<1x128xf32> to vector<32x128xf32>
    %161 = arith.mulf %156, %160 : vector<32x128xf32>
    %162 = vector.broadcast %138 : vector<1x128xf32> to vector<32x128xf32>
    %163 = arith.mulf %161, %162 : vector<32x128xf32>
    %164 = vector.broadcast %139 : vector<1x128xf32> to vector<32x128xf32>
    %165 = arith.addf %163, %164 : vector<32x128xf32>
    %c0_75 = arith.constant 0 : index
    %c0_76 = arith.constant 0 : index
    %166 = vector.load %arg12[%c0_75, %c0_76] : memref<32x128xf32, #tpu.memory_space<vmem>>, vector<32x128xf32>
    tpu.vector_store %arg12[%c0_75, %c0_76], %165 {strides = array<i32>} : memref<32x128xf32, #tpu.memory_space<vmem>>, vector<32x128xf32>,
    return
  }
}

</mosaic_0001>

<llo_original>
// kernel: _conv_forward.1
$region0: #{_conv_forward.1}
  #allocation0 [shape = 'u32[]', space=smem, size = 0x4, offset = 0x4, fixed_abs, tag = 'smem constant byte address 0x4 - core index']
  #allocation1 [shape = 'u32[72,128]{1,0:T(1,128)}', space=vmem, size = 0x9000, scoped, tag = 'internal scratch']
  %s0 = inlined_call_operand.vmem [shape: f32[2], index: 0, kind: input, shape index: {}]
  %s1 = inlined_call_operand.vmem [shape: f32[32,128], index: 1, kind: input, shape index: {}]
  %s2 = inlined_call_operand.vmem [shape: bf16[128,128], index: 2, kind: input, shape index: {}]
  %s3 = inlined_call_operand.vmem [shape: f32[1,128], index: 3, kind: input, shape index: {}]
  %s4 = inlined_call_operand.vmem [shape: f32[1,128], index: 4, kind: input, shape index: {}]
  %s5 = inlined_call_operand.vmem [shape: bf16[3,128,128], index: 5, kind: input, shape index: {}]
  %s6 = inlined_call_operand.vmem [shape: f32[1,128], index: 6, kind: input, shape index: {}]
  %s7 = inlined_call_operand.vmem [shape: f32[1,128], index: 7, kind: input, shape index: {}]
  %s8 = inlined_call_operand.vmem [shape: f32[2,32,128], index: 8, kind: input, shape index: {}]
  %s9 = inlined_call_operand.vmem [shape: f32[1,128], index: 9, kind: input, shape index: {}]
  %s10 = inlined_call_operand.vmem [shape: f32[1,128], index: 10, kind: input, shape index: {}]
  %s11 = inlined_call_operand.vmem [shape: f32[128,128], index: 11, kind: input, shape index: {}]
  %s12 = inlined_call_operand.vmem [shape: f32[32,128], index: 12, kind: output, shape index: {}]
  %s13 = sld [smem:[#allocation0]]
  $region62: #{_conv_forward.1} parent=0
    _
  %s15 = ssub.s32 1, %s13
  %s16 = scalar_select 0, %s15, %s13
  $region1: #{_conv_forward.1} parent=0
    #allocation2 [shape = 'u8[512]{0}', space=smem, size = 0x200, scoped, tag = 'input window, operand 0, single buffered']
    #allocation3 [shape = 's32[1]{0}', space=sflag, size = 0x4, scoped, tag = 'scoped memory for _conv_forward.1']
    %17 = vsyncpa [#allocation3], 0
    // Predicated region
    $region2: #{_conv_forward.1} parent=1 // pred_check
      _
    $region3: #{_conv_forward.1} parent=1 // pred_check_branch
      %19 = sbr.rel (0) target = $region5
    $region4: #{_conv_forward.1} parent=1 // pred_region
      %21 = vsyncadd [#allocation3], 0
      %s23 = sshll.u32 %s0, 4
      %s24 = int_to_ptr.vmem [resolvable:$true] %s23
      %26 = dma.vmem_to_smem %s24, 16, [#allocation2], [#allocation3]
    $region5: #{_conv_forward.1} parent=1 // pred_fallthru
      _
    // Predicated region
    $region6: #{_conv_forward.1} parent=1 // pred_check
      _
    $region7: #{_conv_forward.1} parent=1 // pred_check_branch
      %28 = sbr.rel (0) target = $region9
    $region8: #{_conv_forward.1} parent=1 // pred_region
      _
    $region9: #{_conv_forward.1} parent=1 // pred_fallthru
      _
    // Predicated region
    $region10: #{_conv_forward.1} parent=1 // pred_check
      _
    $region11: #{_conv_forward.1} parent=1 // pred_check_branch
      %30 = sbr.rel (0) target = $region13
    $region12: #{_conv_forward.1} parent=1 // pred_region
      _
    $region13: #{_conv_forward.1} parent=1 // pred_fallthru
      _
    // Predicated region
    $region14: #{_conv_forward.1} parent=1 // pred_check
      _
    $region15: #{_conv_forward.1} parent=1 // pred_check_branch
      %32 = sbr.rel (0) target = $region17
    $region16: #{_conv_forward.1} parent=1 // pred_region
      _
    $region17: #{_conv_forward.1} parent=1 // pred_fallthru
      _
    // Predicated region
    $region18: #{_conv_forward.1} parent=1 // pred_check
      _
    $region19: #{_conv_forward.1} parent=1 // pred_check_branch
      %34 = sbr.rel (0) target = $region21
    $region20: #{_conv_forward.1} parent=1 // pred_region
      _
    $region21: #{_conv_forward.1} parent=1 // pred_fallthru
      _
    // Predicated region
    $region22: #{_conv_forward.1} parent=1 // pred_check
      _
    $region23: #{_conv_forward.1} parent=1 // pred_check_branch
      %36 = sbr.rel (0) target = $region25
    $region24: #{_conv_forward.1} parent=1 // pred_region
      _
    $region25: #{_conv_forward.1} parent=1 // pred_fallthru
      _
    // Predicated region
    $region26: #{_conv_forward.1} parent=1 // pred_check
      _
    $region27: #{_conv_forward.1} parent=1 // pred_check_branch
      %38 = sbr.rel (0) target = $region29
    $region28: #{_conv_forward.1} parent=1 // pred_region
      _
    $region29: #{_conv_forward.1} parent=1 // pred_fallthru
      _
    // Predicated region
    $region30: #{_conv_forward.1} parent=1 // pred_check
      _
    $region31: #{_conv_forward.1} parent=1 // pred_check_branch
      %40 = sbr.rel (0) target = $region33
    $region32: #{_conv_forward.1} parent=1 // pred_region
      _
    $region33: #{_conv_forward.1} parent=1 // pred_fallthru
      _
    // Predicated region
    $region34: #{_conv_forward.1} parent=1 // pred_check
      _
    $region35: #{_conv_forward.1} parent=1 // pred_check_branch
      %42 = sbr.rel (0) target = $region37
    $region36: #{_conv_forward.1} parent=1 // pred_region
      _
    $region37: #{_conv_forward.1} parent=1 // pred_fallthru
      _
    // Predicated region
    $region38: #{_conv_forward.1} parent=1 // pred_check
      _
    $region39: #{_conv_forward.1} parent=1 // pred_check_branch
      %44 = sbr.rel (0) target = $region41
    $region40: #{_conv_forward.1} parent=1 // pred_region
      _
    $region41: #{_conv_forward.1} parent=1 // pred_fallthru
      _
    // Predicated region
    $region42: #{_conv_forward.1} parent=1 // pred_check
      _
    $region43: #{_conv_forward.1} parent=1 // pred_check_branch
      %46 = sbr.rel (0) target = $region45
    $region44: #{_conv_forward.1} parent=1 // pred_region
      _
    $region45: #{_conv_forward.1} parent=1 // pred_fallthru
      _
    // Predicated region
    $region46: #{_conv_forward.1} parent=1 // pred_check
      _
    $region47: #{_conv_forward.1} parent=1 // pred_check_branch
      %48 = sbr.rel (0) target = $region49
    $region48: #{_conv_forward.1} parent=1 // pred_region
      _
    $region49: #{_conv_forward.1} parent=1 // pred_fallthru
      _
    // Predicated region
    $region50: #{_conv_forward.1} parent=1 // pred_check
      _
    $region51: #{_conv_forward.1} parent=1 // pred_check_branch
      %50 = sbr.rel (0) target = $region53
    $region52: #{_conv_forward.1} parent=1 // pred_region
      %52 = dma.done [#allocation3], 16
    $region53: #{_conv_forward.1} parent=1 // pred_fallthru
      _
    %53 = sfence
    %v54 = vld [vmem:[%s11] sm:$0xff]
    %v55 = vld [vmem:[%s11 + $0x8] sm:$0xff]
    %v56 = vld [vmem:[%s11 + $0x10] sm:$0xff]
    %v57 = vld [vmem:[%s11 + $0x18] sm:$0xff]
    %v58 = vld [vmem:[%s11 + $0x20] sm:$0xff]
    %v59 = vld [vmem:[%s11 + $0x28] sm:$0xff]
    %v60 = vld [vmem:[%s11 + $0x30] sm:$0xff]
    %v61 = vld [vmem:[%s11 + $0x38] sm:$0xff]
    %v62 = vld [vmem:[%s11 + $0x40] sm:$0xff]
    %v63 = vld [vmem:[%s11 + $0x48] sm:$0xff]
    %v64 = vld [vmem:[%s11 + $0x50] sm:$0xff]
    %v65 = vld [vmem:[%s11 + $0x58] sm:$0xff]
    %v66 = vld [vmem:[%s11 + $0x60] sm:$0xff]
    %v67 = vld [vmem:[%s11 + $0x68] sm:$0xff]
    %v68 = vld [vmem:[%s11 + $0x70] sm:$0xff]
    %v69 = vld [vmem:[%s11 + $0x78] sm:$0xff]
    %v70 = vld [vmem:[%s1] sm:$0xff]
    %v71 = vld [vmem:[%s1 + $0x8] sm:$0xff]
    %v72 = vld [vmem:[%s1 + $0x10] sm:$0xff]
    %v73 = vld [vmem:[%s1 + $0x18] sm:$0xff]
    %v74 = vpack.c.bf16 %v71, %v70
    %v75 = vpack.c.bf16 %v73, %v72
    %v76 = vld [vmem:[%s2] sm:$0xf]
    %v77 = vld [vmem:[%s2 + $0x4] sm:$0xf]
    %v78 = vld [vmem:[%s2 + $0x8] sm:$0xf]
    %v79 = vld [vmem:[%s2 + $0xc] sm:$0xf]
    %v80 = vld [vmem:[%s2 + $0x10] sm:$0xf]
    %v81 = vld [vmem:[%s2 + $0x14] sm:$0xf]
    %v82 = vld [vmem:[%s2 + $0x18] sm:$0xf]
    %v83 = vld [vmem:[%s2 + $0x1c] sm:$0xf]
    %v84 = vld [vmem:[%s2 + $0x20] sm:$0xf]
    %v85 = vld [vmem:[%s2 + $0x24] sm:$0xf]
    %v86 = vld [vmem:[%s2 + $0x28] sm:$0xf]
    %v87 = vld [vmem:[%s2 + $0x2c] sm:$0xf]
    %v88 = vld [vmem:[%s2 + $0x30] sm:$0xf]
    %v89 = vld [vmem:[%s2 + $0x34] sm:$0xf]
    %v90 = vld [vmem:[%s2 + $0x38] sm:$0xf]
    %v91 = vld [vmem:[%s2 + $0x3c] sm:$0xf]
    %v108 = vunpack.c.l.b16 %v76
    %v109 = vunpack.c.l.b16 %v77
    %v110 = vunpack.c.l.b16 %v78
    %v111 = vunpack.c.l.b16 %v79
    %v112 = vunpack.c.l.b16 %v80
    %v113 = vunpack.c.l.b16 %v81
    %v114 = vunpack.c.l.b16 %v82
    %v115 = vunpack.c.l.b16 %v83
    %v116 = vunpack.c.l.b16 %v84
    %v117 = vunpack.c.l.b16 %v85
    %v118 = vunpack.c.l.b16 %v86
    %v119 = vunpack.c.l.b16 %v87
    %v120 = vunpack.c.l.b16 %v88
    %v121 = vunpack.c.l.b16 %v89
    %v122 = vunpack.c.l.b16 %v90
    %v123 = vunpack.c.l.b16 %v91
    %v124 = vpack.c.b16 %v109, %v108
    %v125 = vpack.c.b16 %v111, %v110
    %v126 = vpack.c.b16 %v113, %v112
    %v127 = vpack.c.b16 %v115, %v114
    %v128 = vpack.c.b16 %v117, %v116
    %v129 = vpack.c.b16 %v119, %v118
    %v130 = vpack.c.b16 %v121, %v120
    %v131 = vpack.c.b16 %v123, %v122
    %140 = vmatpush.bf16.msra.mxu0 %v131
    %141 = vmatpush.bf16.msra.mxu0 %v130
    %142 = vmatpush.bf16.msra.mxu0 %v129
    %143 = vmatpush.bf16.msra.mxu0 %v128
    %144 = vmatpush.bf16.msra.mxu0 %v127
    %145 = vmatpush.bf16.msra.mxu0 %v126
    %146 = vmatpush.bf16.msra.mxu0 %v125
    %147 = vmatpush.bf16.msra.mxu0 %v124
    %148 = vmatmul.bf16.gmra.mxu0 %v74
    %v149 = vpop.f32.mrf.mxu0
    %v150 = vadd.f32 0.0, %v149
    %v151 = vpop.f32.mrf.mxu0
    %v152 = vadd.f32 0.0, %v151
    %153 = vmatmul.bf16.gmra.mxu0 %v75
    %v154 = vpop.f32.mrf.mxu0
    %v155 = vadd.f32 0.0, %v154
    %v156 = vpop.f32.mrf.mxu0
    %v157 = vadd.f32 0.0, %v156
    %158 = vdwg.mxu0
    %v159 = vld [vmem:[%s3] sm:$0x1]
    %v160 = vld [vmem:[%s4] sm:$0x1]
    %v161 = vadd.f32 %v150, %v152
    %v162 = vadd.f32 %v161, %v155
    %v163 = vadd.f32 %v162, %v157
    %v164 = vrot.slane %v163, 4
    %v165 = vadd.f32 %v163, %v164
    %v166 = vrot.slane %v165, 2
    %v167 = vadd.f32 %v165, %v166
    %v168 = vrot.slane %v167, 1
    %v169 = vadd.f32 %v167, %v168
    %170 = vmatpush.msra.mxu0 %v69
    %171 = vmatpush.msra.mxu0 %v68
    %172 = vmatpush.msra.mxu0 %v67
    %173 = vmatpush.msra.mxu0 %v66
    %174 = vmatpush.msra.mxu0 %v65
    %175 = vmatpush.msra.mxu0 %v64
    %176 = vmatpush.msra.mxu0 %v63
    %177 = vmatpush.msra.mxu0 %v62
    %178 = vmatpush.msra.mxu0 %v61
    %179 = vmatpush.msra.mxu0 %v60
    %180 = vmatpush.msra.mxu0 %v59
    %181 = vmatpush.msra.mxu0 %v58
    %182 = vmatpush.msra.mxu0 %v57
    %183 = vmatpush.msra.mxu0 %v56
    %184 = vmatpush.msra.mxu0 %v55
    %185 = vmatpush.msra.mxu0 %v54
    %186 = vmatmul.f32.gmra.mxu0 %v169
    %v187 = vpop.f32.mrf.mxu0
    %v188 = vadd.f32 0.0, %v187
    %189 = vdwg.mxu0
    %v190 = vmul.f32 %v150, %v150
    %v191 = vmul.f32 %v152, %v152
    %v192 = vmul.f32 %v155, %v155
    %v193 = vmul.f32 %v157, %v157
    %v194 = vadd.f32 %v190, %v191
    %v195 = vadd.f32 %v194, %v192
    %v196 = vadd.f32 %v195, %v193
    %v197 = vrot.slane %v196, 4
    %v198 = vadd.f32 %v196, %v197
    %v199 = vrot.slane %v198, 2
    %v200 = vadd.f32 %v198, %v199
    %v201 = vrot.slane %v200, 1
    %v202 = vadd.f32 %v200, %v201
    %203 = vmatpush.msra.mxu0 %v69
    %204 = vmatpush.msra.mxu0 %v68
    %205 = vmatpush.msra.mxu0 %v67
    %206 = vmatpush.msra.mxu0 %v66
    %207 = vmatpush.msra.mxu0 %v65
    %208 = vmatpush.msra.mxu0 %v64
    %209 = vmatpush.msra.mxu0 %v63
    %210 = vmatpush.msra.mxu0 %v62
    %211 = vmatpush.msra.mxu0 %v61
    %212 = vmatpush.msra.mxu0 %v60
    %213 = vmatpush.msra.mxu0 %v59
    %214 = vmatpush.msra.mxu0 %v58
    %215 = vmatpush.msra.mxu0 %v57
    %216 = vmatpush.msra.mxu0 %v56
    %217 = vmatpush.msra.mxu0 %v55
    %218 = vmatpush.msra.mxu0 %v54
    %219 = vmatmul.f32.gmra.mxu0 %v202
    %v220 = vpop.f32.mrf.mxu0
    %v221 = vadd.f32 0.0, %v220
    %222 = vdwg.mxu0
    %v223 = vmul.f32 %v188, 0.001953125
    %v224 = vmul.f32 %v221, 0.001953125
    %v225 = vmul.f32 %v223, %v223
    %v226 = vsub.f32 %v224, %v225
    %v227 = vmax.f32 %v226, 0.0
    %v228 = vperm.slane %v223, 0
    %v229 = vsub.f32 %v150, %v228
    %v230 = vsub.f32 %v152, %v228
    %v231 = vsub.f32 %v155, %v228
    %v232 = vsub.f32 %v157, %v228
    %v233 = vadd.f32 %v227, 1e-05
    %v234 = vrsqrt.pop %v233
    %v235 = vmul.f32 %v234, %v233
    %v236 = vmul.f32 %v235, %v234
    %v237 = vmul.f32 0.5, %v236
    %v238 = vsub.f32 1.5, %v237
    %v239 = vmul.f32 %v234, %v238
    %vm240 = vweird.f32 %v233
    %vm241 = vweird.f32 %v234
    %vm242 = vmor %vm240, %vm241
    %v243 = vsel %vm242, %v234, %v239
    %v244 = vperm.slane %v243, 0
    %v245 = vmul.f32 %v229, %v244
    %v246 = vmul.f32 %v230, %v244
    %v247 = vmul.f32 %v231, %v244
    %v248 = vmul.f32 %v232, %v244
    %v250 = vperm.slane %v159, 0
    %v252 = vmul.f32 %v245, %v250
    %v253 = vmul.f32 %v246, %v250
    %v254 = vmul.f32 %v247, %v250
    %v255 = vmul.f32 %v248, %v250
    %v257 = vperm.slane %v160, 0
    %v259 = vadd.f32 %v252, %v257
    %v260 = vadd.f32 %v253, %v257
    %v261 = vadd.f32 %v254, %v257
    %v262 = vadd.f32 %v255, %v257
    %v263 = vmax.f32 %v259, 0.0
    %v264 = vmax.f32 %v260, 0.0
    %v265 = vmax.f32 %v261, 0.0
    %v266 = vmax.f32 %v262, 0.0
    %v267 = vlaneseq
    %v268 = vshrl.u32 %v267, 7
    %v269 = vadd.s32 %v268, 8
    %v270 = vadd.s32 %v268, 16
    %v271 = vadd.s32 %v268, 24
    %vm272 = vcmp.lt.s32.totalorder %v268, 0
    %v273 = vsub.s32 0, %v268
    %v274 = vsel %vm272, %v273, %v268
    %v275 = vshrl.u32 %v274, 4
    %v276 = vand.u32 %v274, 15
    %v277 = vsub.s32 0, %v276
    %v278 = vsel %vm272, %v277, %v276
    %vm279 = vcmp.lt.s32.totalorder %v269, 0
    %v280 = vsub.s32 0, %v269
    %v281 = vsel %vm279, %v280, %v269
    %v282 = vshrl.u32 %v281, 4
    %v283 = vand.u32 %v281, 15
    %v284 = vsub.s32 0, %v283
    %v285 = vsel %vm279, %v284, %v283
    %vm286 = vcmp.lt.s32.totalorder %v270, 0
    %v287 = vsub.s32 0, %v270
    %v288 = vsel %vm286, %v287, %v270
    %v289 = vshrl.u32 %v288, 4
    %v290 = vand.u32 %v288, 15
    %v291 = vsub.s32 0, %v290
    %v292 = vsel %vm286, %v291, %v290
    %vm293 = vcmp.lt.s32.totalorder %v271, 0
    %v294 = vsub.s32 0, %v271
    %v295 = vsel %vm293, %v294, %v271
    %v296 = vshrl.u32 %v295, 4
    %v297 = vand.u32 %v295, 15
    %v298 = vsub.s32 0, %v297
    %v299 = vsel %vm293, %v298, %v297
    %vm300 = vcmp.ne.s32.totalorder %v278, 0
    %vm301 = vcmp.ne.s32.totalorder %v285, 0
    %vm302 = vcmp.ne.s32.totalorder %v292, 0
    %vm303 = vcmp.ne.s32.totalorder %v299, 0
    %vm304 = vcmp.lt.s32.totalorder %v278, 0
    %vm305 = vcmp.lt.s32.totalorder %v285, 0
    %vm306 = vcmp.lt.s32.totalorder %v292, 0
    %vm307 = vcmp.lt.s32.totalorder %v299, 0
    %vm308 = vmand %vm304, %vm300
    %vm309 = vmand %vm305, %vm301
    %vm310 = vmand %vm306, %vm302
    %vm311 = vmand %vm307, %vm303
    %v312 = vadd.s32 %v278, 16
    %v313 = vadd.s32 %v285, 16
    %v314 = vadd.s32 %v292, 16
    %v315 = vadd.s32 %v299, 16
    %v316 = vsel %vm308, %v312, %v278
    %v317 = vsel %vm309, %v313, %v285
    %v318 = vsel %vm310, %v314, %v292
    %v319 = vsel %vm311, %v315, %v299
    %v320 = vrot.slane %v263, 7
    %v321 = vrot.slane %v264, 7
    %v322 = vrot.slane %v265, 7
    %v323 = vrot.slane %v266, 7
    %vm324 = vcmp.lt.s32.totalorder %v268, 1
    %v325 = vsel %vm324, %v322, %v323
    %v326 = vsel %vm324, %v321, %v322
    %v327 = vsel %vm324, %v320, %v321
    %v328 = vsel %vm324, %v323, %v320
    %v329 = vadd.s32 %v316, 4294967295
    %v330 = vadd.s32 %v317, 4294967295
    %v331 = vadd.s32 %v318, 4294967295
    %v332 = vadd.s32 %v319, 4294967295
    %vm333 = vcmp.ge.s32.totalorder %v329, 0
    %vm334 = vcmp.ge.s32.totalorder %v330, 0
    %vm335 = vcmp.ge.s32.totalorder %v331, 0
    %vm336 = vcmp.ge.s32.totalorder %v332, 0
    %vm337 = vcmp.lt.s32.totalorder %v329, 16
    %vm338 = vcmp.lt.s32.totalorder %v330, 16
    %vm339 = vcmp.lt.s32.totalorder %v331, 16
    %vm340 = vcmp.lt.s32.totalorder %v332, 16
    %vm341 = vmand %vm333, %vm337
    %vm342 = vmand %vm334, %vm338
    %vm343 = vmand %vm335, %vm339
    %vm344 = vmand %vm336, %vm340
    %v345 = vsel %vm341, 1, 0
    %v346 = vsel %vm342, 1, 0
    %v347 = vsel %vm343, 1, 0
    %v348 = vsel %vm344, 1, 0
    %vm349 = vcmp.eq.s32.totalorder %v345, 1
    %vm350 = vcmp.eq.s32.totalorder %v346, 1
    %vm351 = vcmp.eq.s32.totalorder %v347, 1
    %vm352 = vcmp.eq.s32.totalorder %v348, 1
    %v353 = vsel %vm349, %v328, 0.0
    %v354 = vsel %vm350, %v327, 0.0
    %v355 = vsel %vm351, %v326, 0.0
    %v356 = vsel %vm352, %v325, 0.0
    %v357 = vpack.c.bf16 %v354, %v353
    %v358 = vpack.c.bf16 %v356, %v355
    %v359 = vld [vmem:[%s5] sm:$0xf]
    %v360 = vld [vmem:[%s5 + $0x4] sm:$0xf]
    %v361 = vld [vmem:[%s5 + $0x8] sm:$0xf]
    %v362 = vld [vmem:[%s5 + $0xc] sm:$0xf]
    %v363 = vld [vmem:[%s5 + $0x10] sm:$0xf]
    %v364 = vld [vmem:[%s5 + $0x14] sm:$0xf]
    %v365 = vld [vmem:[%s5 + $0x18] sm:$0xf]
    %v366 = vld [vmem:[%s5 + $0x1c] sm:$0xf]
    %v367 = vld [vmem:[%s5 + $0x20] sm:$0xf]
    %v368 = vld [vmem:[%s5 + $0x24] sm:$0xf]
    %v369 = vld [vmem:[%s5 + $0x28] sm:$0xf]
    %v370 = vld [vmem:[%s5 + $0x2c] sm:$0xf]
    %v371 = vld [vmem:[%s5 + $0x30] sm:$0xf]
    %v372 = vld [vmem:[%s5 + $0x34] sm:$0xf]
    %v373 = vld [vmem:[%s5 + $0x38] sm:$0xf]
    %v374 = vld [vmem:[%s5 + $0x3c] sm:$0xf]
    %v375 = vpack.c.bf16 %v264, %v263
    %v376 = vpack.c.bf16 %v266, %v265
    %s377 = scalar_lea.vmem %s5, 64
    %v378 = vld [vmem:[%s377] sm:$0xf]
    %v379 = vld [vmem:[%s377 + $0x4] sm:$0xf]
    %v380 = vld [vmem:[%s377 + $0x8] sm:$0xf]
    %v381 = vld [vmem:[%s377 + $0xc] sm:$0xf]
    %v382 = vld [vmem:[%s377 + $0x10] sm:$0xf]
    %v383 = vld [vmem:[%s377 + $0x14] sm:$0xf]
    %v384 = vld [vmem:[%s377 + $0x18] sm:$0xf]
    %v385 = vld [vmem:[%s377 + $0x1c] sm:$0xf]
    %v386 = vld [vmem:[%s377 + $0x20] sm:$0xf]
    %v387 = vld [vmem:[%s377 + $0x24] sm:$0xf]
    %v388 = vld [vmem:[%s377 + $0x28] sm:$0xf]
    %v389 = vld [vmem:[%s377 + $0x2c] sm:$0xf]
    %v390 = vld [vmem:[%s377 + $0x30] sm:$0xf]
    %v391 = vld [vmem:[%s377 + $0x34] sm:$0xf]
    %v392 = vld [vmem:[%s377 + $0x38] sm:$0xf]
    %v393 = vld [vmem:[%s377 + $0x3c] sm:$0xf]
    %v410 = vunpack.c.l.b16 %v378
    %v411 = vunpack.c.l.b16 %v379
    %v412 = vunpack.c.l.b16 %v380
    %v413 = vunpack.c.l.b16 %v381
    %v414 = vunpack.c.l.b16 %v382
    %v415 = vunpack.c.l.b16 %v383
    %v416 = vunpack.c.l.b16 %v384
    %v417 = vunpack.c.l.b16 %v385
    %v418 = vunpack.c.l.b16 %v386
    %v419 = vunpack.c.l.b16 %v387
    %v420 = vunpack.c.l.b16 %v388
    %v421 = vunpack.c.l.b16 %v389
    %v422 = vunpack.c.l.b16 %v390
    %v423 = vunpack.c.l.b16 %v391
    %v424 = vunpack.c.l.b16 %v392
    %v425 = vunpack.c.l.b16 %v393
    %v426 = vpack.c.b16 %v411, %v410
    %v427 = vpack.c.b16 %v413, %v412
    %v428 = vpack.c.b16 %v415, %v414
    %v429 = vpack.c.b16 %v417, %v416
    %v430 = vpack.c.b16 %v419, %v418
    %v431 = vpack.c.b16 %v421, %v420
    %v432 = vpack.c.b16 %v423, %v422
    %v433 = vpack.c.b16 %v425, %v424
    %442 = vmatpush.bf16.msra.mxu0 %v433
    %443 = vmatpush.bf16.msra.mxu0 %v432
    %444 = vmatpush.bf16.msra.mxu0 %v431
    %445 = vmatpush.bf16.msra.mxu0 %v430
    %446 = vmatpush.bf16.msra.mxu0 %v429
    %447 = vmatpush.bf16.msra.mxu0 %v428
    %448 = vmatpush.bf16.msra.mxu0 %v427
    %449 = vmatpush.bf16.msra.mxu0 %v426
    %450 = vmatmul.bf16.gmra.mxu0 %v375
    %v451 = vpop.f32.mrf.mxu0
    %v452 = vadd.f32 0.0, %v451
    %v453 = vpop.f32.mrf.mxu0
    %v454 = vadd.f32 0.0, %v453
    %455 = vmatmul.bf16.gmra.mxu0 %v376
    %v456 = vpop.f32.mrf.mxu0
    %v457 = vadd.f32 0.0, %v456
    %v458 = vpop.f32.mrf.mxu0
    %v459 = vadd.f32 0.0, %v458
    %460 = vdwg.mxu0
    %v477 = vunpack.c.l.b16 %v359
    %v478 = vunpack.c.l.b16 %v360
    %v479 = vunpack.c.l.b16 %v361
    %v480 = vunpack.c.l.b16 %v362
    %v481 = vunpack.c.l.b16 %v363
    %v482 = vunpack.c.l.b16 %v364
    %v483 = vunpack.c.l.b16 %v365
    %v484 = vunpack.c.l.b16 %v366
    %v485 = vunpack.c.l.b16 %v367
    %v486 = vunpack.c.l.b16 %v368
    %v487 = vunpack.c.l.b16 %v369
    %v488 = vunpack.c.l.b16 %v370
    %v489 = vunpack.c.l.b16 %v371
    %v490 = vunpack.c.l.b16 %v372
    %v491 = vunpack.c.l.b16 %v373
    %v492 = vunpack.c.l.b16 %v374
    %v493 = vpack.c.b16 %v478, %v477
    %v494 = vpack.c.b16 %v480, %v479
    %v495 = vpack.c.b16 %v482, %v481
    %v496 = vpack.c.b16 %v484, %v483
    %v497 = vpack.c.b16 %v486, %v485
    %v498 = vpack.c.b16 %v488, %v487
    %v499 = vpack.c.b16 %v490, %v489
    %v500 = vpack.c.b16 %v492, %v491
    %509 = vmatpush.bf16.msra.mxu0 %v500
    %510 = vmatpush.bf16.msra.mxu0 %v499
    %511 = vmatpush.bf16.msra.mxu0 %v498
    %512 = vmatpush.bf16.msra.mxu0 %v497
    %513 = vmatpush.bf16.msra.mxu0 %v496
    %514 = vmatpush.bf16.msra.mxu0 %v495
    %515 = vmatpush.bf16.msra.mxu0 %v494
    %516 = vmatpush.bf16.msra.mxu0 %v493
    %517 = vmatmul.bf16.gmra.mxu0 %v357
    %v518 = vpop.f32.mrf.mxu0
    %v519 = vadd.f32 %v452, %v518
    %v520 = vpop.f32.mrf.mxu0
    %v521 = vadd.f32 %v454, %v520
    %522 = vmatmul.bf16.gmra.mxu0 %v358
    %v523 = vpop.f32.mrf.mxu0
    %v524 = vadd.f32 %v457, %v523
    %v525 = vpop.f32.mrf.mxu0
    %v526 = vadd.f32 %v459, %v525
    %527 = vdwg.mxu0
    %v528 = vrot.slane %v263, 1
    %v529 = vrot.slane %v264, 1
    %v530 = vrot.slane %v265, 1
    %v531 = vrot.slane %v266, 1
    %vm532 = vcmp.lt.s32.totalorder %v268, 7
    %v533 = vsel %vm532, %v530, %v531
    %v534 = vsel %vm532, %v529, %v530
    %v535 = vsel %vm532, %v528, %v529
    %v536 = vsel %vm532, %v531, %v528
    %v537 = vadd.s32 %v316, 1
    %v538 = vadd.s32 %v317, 1
    %v539 = vadd.s32 %v318, 1
    %v540 = vadd.s32 %v319, 1
    %vm541 = vcmp.ge.s32.totalorder %v537, 0
    %vm542 = vcmp.ge.s32.totalorder %v538, 0
    %vm543 = vcmp.ge.s32.totalorder %v539, 0
    %vm544 = vcmp.ge.s32.totalorder %v540, 0
    %vm545 = vcmp.lt.s32.totalorder %v537, 16
    %vm546 = vcmp.lt.s32.totalorder %v538, 16
    %vm547 = vcmp.lt.s32.totalorder %v539, 16
    %vm548 = vcmp.lt.s32.totalorder %v540, 16
    %vm549 = vmand %vm541, %vm545
    %vm550 = vmand %vm542, %vm546
    %vm551 = vmand %vm543, %vm547
    %vm552 = vmand %vm544, %vm548
    %v553 = vsel %vm549, 1, 0
    %v554 = vsel %vm550, 1, 0
    %v555 = vsel %vm551, 1, 0
    %v556 = vsel %vm552, 1, 0
    %vm557 = vcmp.eq.s32.totalorder %v553, 1
    %vm558 = vcmp.eq.s32.totalorder %v554, 1
    %vm559 = vcmp.eq.s32.totalorder %v555, 1
    %vm560 = vcmp.eq.s32.totalorder %v556, 1
    %v561 = vsel %vm557, %v535, 0.0
    %v562 = vsel %vm558, %v534, 0.0
    %v563 = vsel %vm559, %v533, 0.0
    %v564 = vsel %vm560, %v536, 0.0
    %v565 = vpack.c.bf16 %v562, %v561
    %v566 = vpack.c.bf16 %v564, %v563
    %s567 = scalar_lea.vmem %s5, 128
    %v568 = vld [vmem:[%s567] sm:$0xf]
    %v569 = vld [vmem:[%s567 + $0x4] sm:$0xf]
    %v570 = vld [vmem:[%s567 + $0x8] sm:$0xf]
    %v571 = vld [vmem:[%s567 + $0xc] sm:$0xf]
    %v572 = vld [vmem:[%s567 + $0x10] sm:$0xf]
    %v573 = vld [vmem:[%s567 + $0x14] sm:$0xf]
    %v574 = vld [vmem:[%s567 + $0x18] sm:$0xf]
    %v575 = vld [vmem:[%s567 + $0x1c] sm:$0xf]
    %v576 = vld [vmem:[%s567 + $0x20] sm:$0xf]
    %v577 = vld [vmem:[%s567 + $0x24] sm:$0xf]
    %v578 = vld [vmem:[%s567 + $0x28] sm:$0xf]
    %v579 = vld [vmem:[%s567 + $0x2c] sm:$0xf]
    %v580 = vld [vmem:[%s567 + $0x30] sm:$0xf]
    %v581 = vld [vmem:[%s567 + $0x34] sm:$0xf]
    %v582 = vld [vmem:[%s567 + $0x38] sm:$0xf]
    %v583 = vld [vmem:[%s567 + $0x3c] sm:$0xf]
    %v600 = vunpack.c.l.b16 %v568
    %v601 = vunpack.c.l.b16 %v569
    %v602 = vunpack.c.l.b16 %v570
    %v603 = vunpack.c.l.b16 %v571
    %v604 = vunpack.c.l.b16 %v572
    %v605 = vunpack.c.l.b16 %v573
    %v606 = vunpack.c.l.b16 %v574
    %v607 = vunpack.c.l.b16 %v575
    %v608 = vunpack.c.l.b16 %v576
    %v609 = vunpack.c.l.b16 %v577
    %v610 = vunpack.c.l.b16 %v578
    %v611 = vunpack.c.l.b16 %v579
    %v612 = vunpack.c.l.b16 %v580
    %v613 = vunpack.c.l.b16 %v581
    %v614 = vunpack.c.l.b16 %v582
    %v615 = vunpack.c.l.b16 %v583
    %v616 = vpack.c.b16 %v601, %v600
    %v617 = vpack.c.b16 %v603, %v602
    %v618 = vpack.c.b16 %v605, %v604
    %v619 = vpack.c.b16 %v607, %v606
    %v620 = vpack.c.b16 %v609, %v608
    %v621 = vpack.c.b16 %v611, %v610
    %v622 = vpack.c.b16 %v613, %v612
    %v623 = vpack.c.b16 %v615, %v614
    %632 = vmatpush.bf16.msra.mxu0 %v623
    %633 = vmatpush.bf16.msra.mxu0 %v622
    %634 = vmatpush.bf16.msra.mxu0 %v621
    %635 = vmatpush.bf16.msra.mxu0 %v620
    %636 = vmatpush.bf16.msra.mxu0 %v619
    %637 = vmatpush.bf16.msra.mxu0 %v618
    %638 = vmatpush.bf16.msra.mxu0 %v617
    %639 = vmatpush.bf16.msra.mxu0 %v616
    %640 = vmatmul.bf16.gmra.mxu0 %v565
    %v641 = vpop.f32.mrf.mxu0
    %v642 = vadd.f32 0.0, %v641
    %v643 = vpop.f32.mrf.mxu0
    %v644 = vadd.f32 0.0, %v643
    %645 = vmatmul.bf16.gmra.mxu0 %v566
    %v646 = vpop.f32.mrf.mxu0
    %v647 = vadd.f32 0.0, %v646
    %v648 = vpop.f32.mrf.mxu0
    %v649 = vadd.f32 0.0, %v648
    %650 = vdwg.mxu0
    %v651 = vadd.f32 %v519, %v642
    %v652 = vadd.f32 %v521, %v644
    %v653 = vadd.f32 %v524, %v647
    %v654 = vadd.f32 %v526, %v649
    %v655 = vld [vmem:[%s6] sm:$0x1]
    %v656 = vld [vmem:[%s7] sm:$0x1]
    %v657 = vadd.f32 %v651, %v652
    %v658 = vadd.f32 %v657, %v653
    %v659 = vadd.f32 %v658, %v654
    %v660 = vrot.slane %v659, 4
    %v661 = vadd.f32 %v659, %v660
    %v662 = vrot.slane %v661, 2
    %v663 = vadd.f32 %v661, %v662
    %v664 = vrot.slane %v663, 1
    %v665 = vadd.f32 %v663, %v664
    %666 = vmatpush.msra.mxu0 %v69
    %667 = vmatpush.msra.mxu0 %v68
    %668 = vmatpush.msra.mxu0 %v67
    %669 = vmatpush.msra.mxu0 %v66
    %670 = vmatpush.msra.mxu0 %v65
    %671 = vmatpush.msra.mxu0 %v64
    %672 = vmatpush.msra.mxu0 %v63
    %673 = vmatpush.msra.mxu0 %v62
    %674 = vmatpush.msra.mxu0 %v61
    %675 = vmatpush.msra.mxu0 %v60
    %676 = vmatpush.msra.mxu0 %v59
    %677 = vmatpush.msra.mxu0 %v58
    %678 = vmatpush.msra.mxu0 %v57
    %679 = vmatpush.msra.mxu0 %v56
    %680 = vmatpush.msra.mxu0 %v55
    %681 = vmatpush.msra.mxu0 %v54
    %682 = vmatmul.f32.gmra.mxu0 %v665
    %v683 = vpop.f32.mrf.mxu0
    %v684 = vadd.f32 0.0, %v683
    %685 = vdwg.mxu0
    %v686 = vmul.f32 %v651, %v651
    %v687 = vmul.f32 %v652, %v652
    %v688 = vmul.f32 %v653, %v653
    %v689 = vmul.f32 %v654, %v654
    %v690 = vadd.f32 %v686, %v687
    %v691 = vadd.f32 %v690, %v688
    %v692 = vadd.f32 %v691, %v689
    %v693 = vrot.slane %v692, 4
    %v694 = vadd.f32 %v692, %v693
    %v695 = vrot.slane %v694, 2
    %v696 = vadd.f32 %v694, %v695
    %v697 = vrot.slane %v696, 1
    %v698 = vadd.f32 %v696, %v697
    %699 = vmatpush.msra.mxu0 %v69
    %700 = vmatpush.msra.mxu0 %v68
    %701 = vmatpush.msra.mxu0 %v67
    %702 = vmatpush.msra.mxu0 %v66
    %703 = vmatpush.msra.mxu0 %v65
    %704 = vmatpush.msra.mxu0 %v64
    %705 = vmatpush.msra.mxu0 %v63
    %706 = vmatpush.msra.mxu0 %v62
    %707 = vmatpush.msra.mxu0 %v61
    %708 = vmatpush.msra.mxu0 %v60
    %709 = vmatpush.msra.mxu0 %v59
    %710 = vmatpush.msra.mxu0 %v58
    %711 = vmatpush.msra.mxu0 %v57
    %712 = vmatpush.msra.mxu0 %v56
    %713 = vmatpush.msra.mxu0 %v55
    %714 = vmatpush.msra.mxu0 %v54
    %715 = vmatmul.f32.gmra.mxu0 %v698
    %v716 = vpop.f32.mrf.mxu0
    %v717 = vadd.f32 0.0, %v716
    %718 = vdwg.mxu0
    %v719 = vmul.f32 %v684, 0.001953125
    %v720 = vmul.f32 %v717, 0.001953125
    %v721 = vmul.f32 %v719, %v719
    %v722 = vsub.f32 %v720, %v721
    %v723 = vmax.f32 %v722, 0.0
    %v724 = vperm.slane %v719, 0
    %v725 = vsub.f32 %v651, %v724
    %v726 = vsub.f32 %v652, %v724
    %v727 = vsub.f32 %v653, %v724
    %v728 = vsub.f32 %v654, %v724
    %v729 = vadd.f32 %v723, 1e-05
    %v730 = vrsqrt.pop %v729
    %v731 = vmul.f32 %v730, %v729
    %v732 = vmul.f32 %v731, %v730
    %v733 = vmul.f32 0.5, %v732
    %v734 = vsub.f32 1.5, %v733
    %v735 = vmul.f32 %v730, %v734
    %vm736 = vweird.f32 %v729
    %vm737 = vweird.f32 %v730
    %vm738 = vmor %vm736, %vm737
    %v739 = vsel %vm738, %v730, %v735
    %v740 = vperm.slane %v739, 0
    %v741 = vmul.f32 %v725, %v740
    %v742 = vmul.f32 %v726, %v740
    %v743 = vmul.f32 %v727, %v740
    %v744 = vmul.f32 %v728, %v740
    %v746 = vperm.slane %v655, 0
    %v748 = vmul.f32 %v741, %v746
    %v749 = vmul.f32 %v742, %v746
    %v750 = vmul.f32 %v743, %v746
    %v751 = vmul.f32 %v744, %v746
    %v753 = vperm.slane %v656, 0
    %v755 = vadd.f32 %v748, %v753
    %v756 = vadd.f32 %v749, %v753
    %v757 = vadd.f32 %v750, %v753
    %v758 = vadd.f32 %v751, %v753
    %v759 = vmax.f32 %v755, 0.0
    %v760 = vmax.f32 %v756, 0.0
    %v761 = vmax.f32 %v757, 0.0
    %v762 = vmax.f32 %v758, 0.0
    %s763 = sld [smem:[#allocation2]]
    %v764 = vld [vmem:[%s8] sm:$0xff]
    %v765 = vld [vmem:[%s8 + $0x8] sm:$0xff]
    %v766 = vld [vmem:[%s8 + $0x10] sm:$0xff]
    %v767 = vld [vmem:[%s8 + $0x18] sm:$0xff]
    %v768 = vstv %s763
    %v769 = vmul.f32 %v768, %v764
    %v770 = vmul.f32 %v768, %v765
    %v771 = vmul.f32 %v768, %v766
    %v772 = vmul.f32 %v768, %v767
    %v773 = vadd.f32 %v759, %v769
    %v774 = vadd.f32 %v760, %v770
    %v775 = vadd.f32 %v761, %v771
    %v776 = vadd.f32 %v762, %v772
    %s777 = sld [smem:[#allocation2 + $0x1]]
    %s778 = scalar_lea.vmem %s8, 32
    %v779 = vld [vmem:[%s778] sm:$0xff]
    %v780 = vld [vmem:[%s778 + $0x8] sm:$0xff]
    %v781 = vld [vmem:[%s778 + $0x10] sm:$0xff]
    %v782 = vld [vmem:[%s778 + $0x18] sm:$0xff]
    %v783 = vstv %s777
    %v784 = vmul.f32 %v783, %v779
    %v785 = vmul.f32 %v783, %v780
    %v786 = vmul.f32 %v783, %v781
    %v787 = vmul.f32 %v783, %v782
    %v788 = vadd.f32 %v773, %v784
    %v789 = vadd.f32 %v774, %v785
    %v790 = vadd.f32 %v775, %v786
    %v791 = vadd.f32 %v776, %v787
    %v792 = vld [vmem:[%s9] sm:$0x1]
    %v793 = vld [vmem:[%s10] sm:$0x1]
    %v794 = vadd.f32 %v788, %v789
    %v795 = vadd.f32 %v794, %v790
    %v796 = vadd.f32 %v795, %v791
    %v797 = vrot.slane %v796, 4
    %v798 = vadd.f32 %v796, %v797
    %v799 = vrot.slane %v798, 2
    %v800 = vadd.f32 %v798, %v799
    %v801 = vrot.slane %v800, 1
    %v802 = vadd.f32 %v800, %v801
    %803 = vmatpush.msra.mxu0 %v69
    %804 = vmatpush.msra.mxu0 %v68
    %805 = vmatpush.msra.mxu0 %v67
    %806 = vmatpush.msra.mxu0 %v66
    %807 = vmatpush.msra.mxu0 %v65
    %808 = vmatpush.msra.mxu0 %v64
    %809 = vmatpush.msra.mxu0 %v63
    %810 = vmatpush.msra.mxu0 %v62
    %811 = vmatpush.msra.mxu0 %v61
    %812 = vmatpush.msra.mxu0 %v60
    %813 = vmatpush.msra.mxu0 %v59
    %814 = vmatpush.msra.mxu0 %v58
    %815 = vmatpush.msra.mxu0 %v57
    %816 = vmatpush.msra.mxu0 %v56
    %817 = vmatpush.msra.mxu0 %v55
    %818 = vmatpush.msra.mxu0 %v54
    %819 = vmatmul.f32.gmra.mxu0 %v802
    %v820 = vpop.f32.mrf.mxu0
    %v821 = vadd.f32 0.0, %v820
    %822 = vdwg.mxu0
    %v823 = vmul.f32 %v788, %v788
    %v824 = vmul.f32 %v789, %v789
    %v825 = vmul.f32 %v790, %v790
    %v826 = vmul.f32 %v791, %v791
    %v827 = vadd.f32 %v823, %v824
    %v828 = vadd.f32 %v827, %v825
    %v829 = vadd.f32 %v828, %v826
    %v830 = vrot.slane %v829, 4
    %v831 = vadd.f32 %v829, %v830
    %v832 = vrot.slane %v831, 2
    %v833 = vadd.f32 %v831, %v832
    %v834 = vrot.slane %v833, 1
    %v835 = vadd.f32 %v833, %v834
    %836 = vmatpush.msra.mxu0 %v69
    %837 = vmatpush.msra.mxu0 %v68
    %838 = vmatpush.msra.mxu0 %v67
    %839 = vmatpush.msra.mxu0 %v66
    %840 = vmatpush.msra.mxu0 %v65
    %841 = vmatpush.msra.mxu0 %v64
    %842 = vmatpush.msra.mxu0 %v63
    %843 = vmatpush.msra.mxu0 %v62
    %844 = vmatpush.msra.mxu0 %v61
    %845 = vmatpush.msra.mxu0 %v60
    %846 = vmatpush.msra.mxu0 %v59
    %847 = vmatpush.msra.mxu0 %v58
    %848 = vmatpush.msra.mxu0 %v57
    %849 = vmatpush.msra.mxu0 %v56
    %850 = vmatpush.msra.mxu0 %v55
    %851 = vmatpush.msra.mxu0 %v54
    %852 = vmatmul.f32.gmra.mxu0 %v835
    %v853 = vpop.f32.mrf.mxu0
    %v854 = vadd.f32 0.0, %v853
    %855 = vdwg.mxu0
    %v856 = vmul.f32 %v821, 0.001953125
    %v857 = vmul.f32 %v854, 0.001953125
    %v858 = vmul.f32 %v856, %v856
    %v859 = vsub.f32 %v857, %v858
    %v860 = vmax.f32 %v859, 0.0
    %v861 = vperm.slane %v856, 0
    %v862 = vsub.f32 %v788, %v861
    %v863 = vsub.f32 %v789, %v861
    %v864 = vsub.f32 %v790, %v861
    %v865 = vsub.f32 %v791, %v861
    %v866 = vadd.f32 %v860, 1e-05
    %v867 = vrsqrt.pop %v866
    %v868 = vmul.f32 %v867, %v866
    %v869 = vmul.f32 %v868, %v867
    %v870 = vmul.f32 0.5, %v869
    %v871 = vsub.f32 1.5, %v870
    %v872 = vmul.f32 %v867, %v871
    %vm873 = vweird.f32 %v866
    %vm874 = vweird.f32 %v867
    %vm875 = vmor %vm873, %vm874
    %v876 = vsel %vm875, %v867, %v872
    %v877 = vperm.slane %v876, 0
    %v878 = vmul.f32 %v862, %v877
    %v879 = vmul.f32 %v863, %v877
    %v880 = vmul.f32 %v864, %v877
    %v881 = vmul.f32 %v865, %v877
    %v883 = vperm.slane %v792, 0
    %v885 = vmul.f32 %v878, %v883
    %v886 = vmul.f32 %v879, %v883
    %v887 = vmul.f32 %v880, %v883
    %v888 = vmul.f32 %v881, %v883
    %v890 = vperm.slane %v793, 0
    %v892 = vadd.f32 %v885, %v890
    %v893 = vadd.f32 %v886, %v890
    %v894 = vadd.f32 %v887, %v890
    %v895 = vadd.f32 %v888, %v890
    %896 = vst [vmem:[%s12] sm:$0xff] %v892
    %897 = vst [vmem:[%s12 + $0x8] sm:$0xff] %v893
    %898 = vst [vmem:[%s12 + $0x10] sm:$0xff] %v894
    %899 = vst [vmem:[%s12 + $0x18] sm:$0xff] %v895
    // Predicated region
    $region54: #{_conv_forward.1} parent=1 // pred_check
      _
    $region55: #{_conv_forward.1} parent=1 // pred_check_branch
      %901 = sbr.rel (0) target = $region57
    $region56: #{_conv_forward.1} parent=1 // pred_region
      _
    $region57: #{_conv_forward.1} parent=1 // pred_fallthru
      _
    // Predicated region
    $region58: #{_conv_forward.1} parent=1 // pred_check
      _
    $region59: #{_conv_forward.1} parent=1 // pred_check_branch
      %903 = sbr.rel (0) target = $region61
    $region60: #{_conv_forward.1} parent=1 // pred_region
      _
    $region61: #{_conv_forward.1} parent=1 // pred_fallthru
      _
    %904 = vsyncpa [#allocation3], 1

</llo_original>
